<compile_context>
chip_gen: v7x
topology: tpu7x:2x2x1
jax: 0.10.0
libtpu: 0.0.40
codegen_flags: <defaults>
</compile_context>

<pallas_src>
import jax
import jax.numpy as jnp
from jax.experimental import pallas as pl
from jax.experimental.pallas import tpu as pltpu


def _round_up(v, m):
    return ((v + m - 1) // m) * m


def _linear_grouping_kernel(cdst_ref, csrcT_ref, x_src_ref, adj_ref, out_ref, deg_ref):
    k = pl.program_id(1)
    nk = pl.num_programs(1)

    @pl.when(k == 0)
    def _():
        out_ref[...] = jnp.zeros_like(out_ref)
        deg_ref[...] = jnp.zeros_like(deg_ref)

    adj = adj_ref[...].astype(jnp.float32)          # [TM, TK]; int8 0/1 -> f32, exact
    cdst = cdst_ref[...]                            # [TM, G]  precomputed softmax coeff (dst rows)
    csrcT = csrcT_ref[...]                          # [G, TK]  precomputed softmax coeff (src rows, transposed)

    # Gate S[i, j] = coeff_dst[i] . coeff_src[j] as G VPU broadcast-FMAs.
    # (A K=G MXU dot_general would pad the contraction to full MXU depth and cost
    #  as many push-passes as the main adjacency matmul.)
    G = cdst.shape[1]
    s_gate = cdst[:, 0:1] * csrcT[0:1, :]
    for g in range(1, G):
        s_gate = s_gate + cdst[:, g:g + 1] * csrcT[g:g + 1, :]

    # in-degree accumulates across src tiles (XLU row reduce, rides a free slot)
    deg_ref[...] += jnp.sum(adj, axis=1, keepdims=True)

    # single fused adjacency-sized matmul against x, accumulated directly in the f32 output block
    out_ref[...] += jnp.dot(adj * s_gate, x_src_ref[...],
                            preferred_element_type=jnp.float32)

    @pl.when(k == nk - 1)
    def _():
        d = deg_ref[...]
        inv_deg = jnp.where(d > 0, 1.0 / d, 0.0)    # nodes w/o in-edges -> 0 (DGL default fill)
        out_ref[...] = out_ref[...] * inv_deg


def linear_grouping(x, adj, weight, bias, *, temperature=1.0, tile=1024):
    """x: [N, D], adj: [N, N] with adj[dst, src] = 1, weight: torch layout [G, D], bias: [G]."""
    N, D = x.shape
    G = weight.shape[0]

    Dp = _round_up(D, 128)                              # lane-dense feature dim (unmasked vst)
    TT = min(_round_up(tile, 128), _round_up(N, 128))   # square node tile, multiple of 128
    Np = _round_up(N, TT)
    ni = Np // TT
    nk = ni

    xf = x.astype(jnp.float32)
    wf = weight.astype(jnp.float32)
    bf = bias.astype(jnp.float32)

    # Precompute coeff once (tiny [N,D]@[D,G] matmul + softmax) instead of per src tile in-kernel.
    scores = (xf @ wf.T + bf) / temperature
    coeff = jax.nn.softmax(scores, axis=1)              # [N, G]

    # Zero-pad only when needed (padding the O(N^2) adjacency is itself HBM traffic).
    if N == Np and D == Dp:
        x_p = xf
    else:
        x_p = jnp.zeros((Np, Dp), jnp.float32).at[:N, :D].set(xf)
    if N == Np:
        coeff_p = coeff
        adj_p = adj.astype(jnp.int8)                    # 0/1 exact; 1 B/elem HBM stream
    else:
        coeff_p = jnp.zeros((Np, G), jnp.float32).at[:N, :].set(coeff)
        adj_p = jnp.zeros((Np, Np), jnp.int8).at[:N, :N].set(adj.astype(jnp.int8))
    coeffT_p = coeff_p.T                                # [G, Np], tiny

    cost = pl.CostEstimate(
        flops=int(2 * Np * Np * Dp                      # main adjacency matmul
                  + Np * Np * (2 * G + 2)),             # VPU gate + adj mask + deg reduce
        transcendentals=0,                              # softmax moved to the wrapper
        bytes_accessed=int(Np * Np * 1                  # int8 adjacency (dominant stream)
                           + ni * Np * Dp * 4           # x re-streamed per dst tile
                           + Np * Dp * 4                # output
                           + (ni + 1) * Np * G * 4),    # coeff streams
    )

    out_p = pl.pallas_call(
        _linear_grouping_kernel,
        out_shape=jax.ShapeDtypeStruct((Np, Dp), jnp.float32),
        grid_spec=pltpu.PrefetchScalarGridSpec(
            num_scalar_prefetch=0,
            grid=(ni, nk),
            in_specs=[
                pl.BlockSpec((TT, G), lambda i, k: (i, 0)),    # coeff, dst rows
                pl.BlockSpec((G, TT), lambda i, k: (0, k)),    # coeff^T, src cols
                pl.BlockSpec((TT, Dp), lambda i, k: (k, 0)),   # x, src rows
                pl.BlockSpec((TT, TT), lambda i, k: (i, k)),   # adjacency tile (int8)
            ],
            out_specs=pl.BlockSpec((TT, Dp), lambda i, k: (i, 0)),
            scratch_shapes=[
                pltpu.VMEM((TT, 1), jnp.float32),              # in-degree accumulator
            ],
        ),
        compiler_params=pltpu.CompilerParams(
            dimension_semantics=("parallel", "arbitrary"),
            vmem_limit_bytes=32 * 1024 * 1024,
        ),
        cost_estimate=cost,
    )(coeff_p, coeffT_p, x_p, adj_p)
    return out_p[:N, :D]


def linear_grouping_ref(x, adj, weight, bias, *, temperature=1.0):
    scores = x @ weight.T + bias
    coeff = jax.nn.softmax(scores / temperature, axis=1)              # [N, G]
    wif = x[:, None, :] * coeff[:, :, None]                           # [N, G, D]
    deg = adj.sum(axis=1)                                             # [N]
    inv_deg = jnp.where(deg > 0, 1.0 / deg, 0.0)
    group_feat = jnp.einsum("ij,jgd->igd", adj, wif) * inv_deg[:, None, None]
    return (group_feat * coeff[:, :, None]).sum(axis=1)               # [N, D]


if __name__ == "__main__":
    def make_case(key, N, D, G):
        kx, kw, kb = jax.random.split(key, 3)
        x = jax.random.normal(kx, (N, D), dtype=jnp.float32)
        bound = 1.0 / (D ** 0.5)
        weight = jax.random.uniform(kw, (G, D), minval=-bound, maxval=bound, dtype=jnp.float32)
        bias = jax.random.uniform(kb, (G,), minval=-bound, maxval=bound, dtype=jnp.float32)
        # deterministic graph: ring edges j -> (j+1)%N and skip edges j -> (j+3)%N
        src = jnp.concatenate([jnp.arange(N), jnp.arange(N)])
        dst = jnp.concatenate([(jnp.arange(N) + 1) % N, (jnp.arange(N) + 3) % N])
        adj = jnp.zeros((N, N), dtype=jnp.float32).at[dst, src].set(1.0)   # [dst, src]
        return x, adj, weight, bias

    T = 1.0

    # case 1: module-sized small shapes (single padded tile)
    N, D, G = 8, 32, 3
    x, adj, weight, bias = make_case(jax.random.PRNGKey(0), N, D, G)
    out = jax.block_until_ready(linear_grouping(x, adj, weight, bias, temperature=T))
    ref = linear_grouping_ref(x, adj, weight, bias, temperature=T)
    assert out.shape == (N, D)
    assert jnp.allclose(out, ref, atol=1e-5, rtol=1e-4), "mismatch vs reference (case 1)"

    # case 2: multi-tile grid (3x3) with row/col padding and a zero-in-degree node
    N2, D2, G2 = 300, 32, 3
    x2, adj2, weight2, bias2 = make_case(jax.random.PRNGKey(1), N2, D2, G2)
    adj2 = adj2.at[0, :].set(0.0)   # node 0 has no in-edges -> its output row must be 0
    out2 = jax.block_until_ready(
        linear_grouping(x2, adj2, weight2, bias2, temperature=T, tile=128))
    ref2 = linear_grouping_ref(x2, adj2, weight2, bias2, temperature=T)
    assert out2.shape == (N2, D2)
    assert jnp.allclose(out2, ref2, atol=1e-5, rtol=1e-4), "mismatch vs reference (case 2)"

    # TODO(synk): use_hard_assign branch raises NotImplementedError in the torch module; not implemented here.
    print("KERNEL_OK")
</pallas_src>

<mosaic_0001>
module attributes {stable_mosaic.version = 11 : i64} {
  func.func @_linear_grouping_kernel(%arg0: i32, %arg1: i32, %arg2: memref<128x3xf32, #tpu.memory_space<vmem>>, %arg3: memref<3x128xf32, #tpu.memory_space<vmem>>, %arg4: memref<128x128xf32, #tpu.memory_space<vmem>>, %arg5: memref<128x128xi8, #tpu.memory_space<vmem>>, %arg6: memref<128x128xf32, #tpu.memory_space<vmem>>, %arg7: memref<128x1xf32, #tpu.memory_space<vmem>>) attributes {dimension_semantics = [#tpu.dimension_semantics<parallel>, #tpu.dimension_semantics<arbitrary>], iteration_bounds = array<i64: 1, 1>, scalar_prefetch = 0 : i64, scratch_operands = 1 : i64, tpu.core_type = #tpu.core_type<tc>, window_params = [{transform_indices = @transform_0, window_bounds = array<i64: 128, 3>}, {transform_indices = @transform_1, window_bounds = array<i64: 3, 128>}, {transform_indices = @transform_2, window_bounds = array<i64: 128, 128>}, {transform_indices = @transform_3, window_bounds = array<i64: 128, 128>}, {transform_indices = @transform_4, window_bounds = array<i64: 128, 128>}]} {
    %c0_i32 = arith.constant 0 : i32
    %0 = arith.cmpi eq, %arg1, %c0_i32 : i32
    %1 = arith.extui %0 : i1 to i32
    %c0_i32_0 = arith.constant 0 : i32
    %2 = arith.cmpi ne, %1, %c0_i32_0 : i32
    scf.if %2 {
      %cst_19 = arith.constant 0.000000e+00 : f32
      %38 = vector.broadcast %cst_19 : f32 to vector<128x128xf32>
      %c0_20 = arith.constant 0 : index
      %c0_21 = arith.constant 0 : index
      %39 = vector.load %arg6[%c0_20, %c0_21] : memref<128x128xf32, #tpu.memory_space<vmem>>, vector<128x128xf32>
      tpu.vector_store %arg6[%c0_20, %c0_21], %38 {strides = array<i32>} : memref<128x128xf32, #tpu.memory_space<vmem>>, vector<128x128xf32>,
      %cst_22 = arith.constant 0.000000e+00 : f32
      %40 = vector.broadcast %cst_22 : f32 to vector<128x1xf32>
      %c0_23 = arith.constant 0 : index
      %c0_24 = arith.constant 0 : index
      %41 = vector.load %arg7[%c0_23, %c0_24] : memref<128x1xf32, #tpu.memory_space<vmem>>, vector<128x1xf32>
      tpu.vector_store %arg7[%c0_23, %c0_24], %40 {strides = array<i32>} : memref<128x1xf32, #tpu.memory_space<vmem>>, vector<128x1xf32>,
    } else {
    }
    %c0 = arith.constant 0 : index
    %c0_1 = arith.constant 0 : index
    %3 = vector.load %arg5[%c0, %c0_1] : memref<128x128xi8, #tpu.memory_space<vmem>>, vector<128x128xi8>
    %4 = arith.sitofp %3 : vector<128x128xi8> to vector<128x128xf32>
    %c0_2 = arith.constant 0 : index
    %c0_3 = arith.constant 0 : index
    %5 = vector.load %arg2[%c0_2, %c0_3] : memref<128x3xf32, #tpu.memory_space<vmem>>, vector<128x3xf32>
    %c0_4 = arith.constant 0 : index
    %c0_5 = arith.constant 0 : index
    %6 = vector.load %arg3[%c0_4, %c0_5] : memref<3x128xf32, #tpu.memory_space<vmem>>, vector<3x128xf32>
    %7 = vector.extract_strided_slice %5 {offsets = [0, 0], sizes = [128, 1], strides = [1, 1]} : vector<128x3xf32> to vector<128x1xf32>
    %8 = vector.extract_strided_slice %6 {offsets = [0, 0], sizes = [1, 128], strides = [1, 1]} : vector<3x128xf32> to vector<1x128xf32>
    %9 = vector.broadcast %7 : vector<128x1xf32> to vector<128x128xf32>
    %10 = vector.broadcast %8 : vector<1x128xf32> to vector<128x128xf32>
    %11 = arith.mulf %9, %10 : vector<128x128xf32>
    %12 = vector.extract_strided_slice %5 {offsets = [0, 1], sizes = [128, 1], strides = [1, 1]} : vector<128x3xf32> to vector<128x1xf32>
    %13 = vector.extract_strided_slice %6 {offsets = [1, 0], sizes = [1, 128], strides = [1, 1]} : vector<3x128xf32> to vector<1x128xf32>
    %14 = vector.broadcast %12 : vector<128x1xf32> to vector<128x128xf32>
    %15 = vector.broadcast %13 : vector<1x128xf32> to vector<128x128xf32>
    %16 = arith.mulf %14, %15 : vector<128x128xf32>
    %17 = arith.addf %11, %16 : vector<128x128xf32>
    %18 = vector.extract_strided_slice %5 {offsets = [0, 2], sizes = [128, 1], strides = [1, 1]} : vector<128x3xf32> to vector<128x1xf32>
    %19 = vector.extract_strided_slice %6 {offsets = [2, 0], sizes = [1, 128], strides = [1, 1]} : vector<3x128xf32> to vector<1x128xf32>
    %20 = vector.broadcast %18 : vector<128x1xf32> to vector<128x128xf32>
    %21 = vector.broadcast %19 : vector<1x128xf32> to vector<128x128xf32>
    %22 = arith.mulf %20, %21 : vector<128x128xf32>
    %23 = arith.addf %17, %22 : vector<128x128xf32>
    %c0_6 = arith.constant 0 : index
    %c0_7 = arith.constant 0 : index
    %24 = vector.load %arg7[%c0_6, %c0_7] : memref<128x1xf32, #tpu.memory_space<vmem>>, vector<128x1xf32>
    %cst = arith.constant dense<0.000000e+00> : vector<128xf32>
    %25 = vector.multi_reduction <add>, %4, %cst [1] : vector<128x128xf32> to vector<128xf32>
    %26 = vector.shape_cast %25 : vector<128xf32> to vector<128x1xf32>
    %27 = arith.addf %24, %26 : vector<128x1xf32>
    %c0_8 = arith.constant 0 : index
    %c0_9 = arith.constant 0 : index
    %28 = vector.load %arg7[%c0_8, %c0_9] : memref<128x1xf32, #tpu.memory_space<vmem>>, vector<128x1xf32>
    tpu.vector_store %arg7[%c0_8, %c0_9], %27 {strides = array<i32>} : memref<128x1xf32, #tpu.memory_space<vmem>>, vector<128x1xf32>,
    %c0_10 = arith.constant 0 : index
    %c0_11 = arith.constant 0 : index
    %29 = vector.load %arg6[%c0_10, %c0_11] : memref<128x128xf32, #tpu.memory_space<vmem>>, vector<128x128xf32>
    %30 = arith.mulf %4, %23 : vector<128x128xf32>
    %c0_12 = arith.constant 0 : index
    %c0_13 = arith.constant 0 : index
    %31 = vector.load %arg4[%c0_12, %c0_13] : memref<128x128xf32, #tpu.memory_space<vmem>>, vector<128x128xf32>
    %cst_14 = arith.constant dense<0.000000e+00> : vector<128x128xf32>
    %32 = tpu.matmul %30, %31, %cst_14 {dimension_numbers = #tpu.dot_dimension_numbers<[1], [0], [0], [1], [0, 0, 1, 1], [], []>} : vector<128x128xf32>, vector<128x128xf32>, vector<128x128xf32> -> vector<128x128xf32>
    %33 = arith.addf %29, %32 : vector<128x128xf32>
    %c0_15 = arith.constant 0 : index
    %c0_16 = arith.constant 0 : index
    %34 = vector.load %arg6[%c0_15, %c0_16] : memref<128x128xf32, #tpu.memory_space<vmem>>, vector<128x128xf32>
    tpu.vector_store %arg6[%c0_15, %c0_16], %33 {strides = array<i32>} : memref<128x128xf32, #tpu.memory_space<vmem>>, vector<128x128xf32>,
    %c0_i32_17 = arith.constant 0 : i32
    %35 = arith.cmpi eq, %arg1, %c0_i32_17 : i32
    %36 = arith.extui %35 : i1 to i32
    %c0_i32_18 = arith.constant 0 : i32
    %37 = arith.cmpi ne, %36, %c0_i32_18 : i32
    scf.if %37 {
      %c0_19 = arith.constant 0 : index
      %c0_20 = arith.constant 0 : index
      %38 = vector.load %arg7[%c0_19, %c0_20] : memref<128x1xf32, #tpu.memory_space<vmem>>, vector<128x1xf32>
      %cst_21 = arith.constant 0.000000e+00 : f32
      %39 = vector.broadcast %cst_21 : f32 to vector<128x1xf32>
      %40 = arith.cmpf ogt, %38, %39 : vector<128x1xf32>
      %cst_22 = arith.constant 1.000000e+00 : f32
      %41 = vector.broadcast %cst_22 : f32 to vector<128x1xf32>
      %42 = arith.divf %41, %38 : vector<128x1xf32>
      %cst_23 = arith.constant 0.000000e+00 : f32
      %43 = vector.broadcast %cst_23 : f32 to vector<128x1xf32>
      %44 = arith.select %40, %42, %43 : vector<128x1xi1>, vector<128x1xf32>
      %c0_24 = arith.constant 0 : index
      %c0_25 = arith.constant 0 : index
      %45 = vector.load %arg6[%c0_24, %c0_25] : memref<128x128xf32, #tpu.memory_space<vmem>>, vector<128x128xf32>
      %46 = vector.broadcast %44 : vector<128x1xf32> to vector<128x128xf32>
      %47 = arith.mulf %45, %46 : vector<128x128xf32>
      %c0_26 = arith.constant 0 : index
      %c0_27 = arith.constant 0 : index
      %48 = vector.load %arg6[%c0_26, %c0_27] : memref<128x128xf32, #tpu.memory_space<vmem>>, vector<128x128xf32>
      tpu.vector_store %arg6[%c0_26, %c0_27], %47 {strides = array<i32>} : memref<128x128xf32, #tpu.memory_space<vmem>>, vector<128x128xf32>,
    } else {
    }
    return
  }
  func.func @transform_0(%arg0: i32, %arg1: i32) -> (i32, i32) {
    %c0_i32 = arith.constant 0 : i32
    %c0_i32_0 = arith.constant 0 : i32
    return %arg0, %c0_i32 : i32, i32
  }
  func.func @transform_1(%arg0: i32, %arg1: i32) -> (i32, i32) {
    %c0_i32 = arith.constant 0 : i32
    %c0_i32_0 = arith.constant 0 : i32
    return %c0_i32, %arg1 : i32, i32
  }
  func.func @transform_2(%arg0: i32, %arg1: i32) -> (i32, i32) {
    %c0_i32 = arith.constant 0 : i32
    %c0_i32_0 = arith.constant 0 : i32
    return %arg1, %c0_i32 : i32, i32
  }
  func.func @transform_3(%arg0: i32, %arg1: i32) -> (i32, i32) {
    %c0_i32 = arith.constant 0 : i32
    return %arg0, %arg1 : i32, i32
  }
  func.func @transform_4(%arg0: i32, %arg1: i32) -> (i32, i32) {
    %c0_i32 = arith.constant 0 : i32
    %c0_i32_0 = arith.constant 0 : i32
    return %arg0, %c0_i32 : i32, i32
  }
}

</mosaic_0001>

<llo_original>
// kernel: tpu_custom_call.1
$region0: #{tpu_custom_call.1}
  #allocation0 [shape = 'u32[]', space=smem, size = 0x4, offset = 0x4, fixed_abs, tag = 'smem constant byte address 0x4 - core index']
  #allocation1 [shape = 'u32[144,128]{1,0:T(1,128)}', space=vmem, size = 0x12000, scoped, tag = 'internal scratch']
  #allocation2 [shape = 'f32[128,1]{1,0:T(8,128)}', space=vmem, size = 0x10000, scoped, tag = 'scratch operand']
  %s0 = inlined_call_operand.vmem [shape: f32[128,3], index: 0, kind: input, shape index: {}]
  %s1 = inlined_call_operand.vmem [shape: f32[3,128], index: 1, kind: input, shape index: {}]
  %s2 = inlined_call_operand.vmem [shape: f32[128,128], index: 2, kind: input, shape index: {}]
  %s3 = inlined_call_operand.hbm [shape: s8[128,128], index: 3, kind: input, shape index: {}]
  %s4 = inlined_call_operand.hbm [shape: f32[128,128], index: 4, kind: output, shape index: {}]
  %s5 = sld [smem:[#allocation0]]
  $region38: #{tpu_custom_call.1} parent=0
    _
  %s7 = ssub.s32 1, %s5
  %s8 = scalar_select 0, %s7, %s5
  $region1: #{tpu_custom_call.1} parent=0
    #allocation3 [shape = 'u8[16384]{0}', space=vmem, size = 0x4000, scoped, tag = 'input window, operand 3, single buffered']
    #allocation4 [shape = 's32[1]{0}', space=sflag, size = 0x4, scoped, tag = 'scoped memory for tpu_custom_call.1']
    #allocation5 [shape = 's32[1]{0}', space=sflag, size = 0x4, scoped, tag = 'scoped memory for tpu_custom_call.1']
    #allocation6 [shape = 'u8[65536]{0}', space=vmem, size = 0x10000, scoped, tag = 'output window, operand 0, single buffered']
    %9 = vsyncpa [#allocation4], 0
    %10 = vsyncpa [#allocation5], 0
    // Predicated region
    $region2: #{tpu_custom_call.1} parent=1 // pred_check
      _
    $region3: #{tpu_custom_call.1} parent=1 // pred_check_branch
      %12 = sbr.rel (0) target = $region5
    $region4: #{tpu_custom_call.1} parent=1 // pred_region
      _
    $region5: #{tpu_custom_call.1} parent=1 // pred_fallthru
      _
    // Predicated region
    $region6: #{tpu_custom_call.1} parent=1 // pred_check
      _
    $region7: #{tpu_custom_call.1} parent=1 // pred_check_branch
      %14 = sbr.rel (0) target = $region9
    $region8: #{tpu_custom_call.1} parent=1 // pred_region
      _
    $region9: #{tpu_custom_call.1} parent=1 // pred_fallthru
      _
    // Predicated region
    $region10: #{tpu_custom_call.1} parent=1 // pred_check
      _
    $region11: #{tpu_custom_call.1} parent=1 // pred_check_branch
      %16 = sbr.rel (0) target = $region13
    $region12: #{tpu_custom_call.1} parent=1 // pred_region
      _
    $region13: #{tpu_custom_call.1} parent=1 // pred_fallthru
      _
    // Predicated region
    $region14: #{tpu_custom_call.1} parent=1 // pred_check
      _
    $region15: #{tpu_custom_call.1} parent=1 // pred_check_branch
      %18 = sbr.rel (0) target = $region17
    $region16: #{tpu_custom_call.1} parent=1 // pred_region
      %s20 = ssub.s32 512, 512
      %21 = vsyncadd [#allocation4], %s20
      %s22 = sshll.u32 [#allocation3], 4
      %s23 = int_to_ptr.vmem [resolvable:$true] %s22
      %28 = dma.hbm_to_vmem [thread:$0]  %s3, 512, %s23, [#allocation4], 128, 128, 8
    $region17: #{tpu_custom_call.1} parent=1 // pred_fallthru
      _
    // Predicated region
    $region18: #{tpu_custom_call.1} parent=1 // pred_check
      _
    $region19: #{tpu_custom_call.1} parent=1 // pred_check_branch
      %30 = sbr.rel (0) target = $region21
    $region20: #{tpu_custom_call.1} parent=1 // pred_region
      %31 = dma.done [#allocation4], 512
    $region21: #{tpu_custom_call.1} parent=1 // pred_fallthru
      _
    %p32 = scmp.eq.s32.totalorder 0, 0
    // Predicated region
    $region22: #{tpu_custom_call.1} parent=1 // pred_check
      %p33 = pneg %p32
    $region23: #{tpu_custom_call.1} parent=1 // pred_check_branch
      %35 = sbr.rel (%p33) target = $region25
    $region24: #{tpu_custom_call.1} parent=1 // pred_region
      %36 = vst [vmem:[#allocation6] sm:$0xff] 0.0
      %37 = vst [vmem:[#allocation6 + $0x8] sm:$0xff] 0.0
      %38 = vst [vmem:[#allocation6 + $0x10] sm:$0xff] 0.0
      %39 = vst [vmem:[#allocation6 + $0x18] sm:$0xff] 0.0
      %40 = vst [vmem:[#allocation6 + $0x20] sm:$0xff] 0.0
      %41 = vst [vmem:[#allocation6 + $0x28] sm:$0xff] 0.0
      %42 = vst [vmem:[#allocation6 + $0x30] sm:$0xff] 0.0
      %43 = vst [vmem:[#allocation6 + $0x38] sm:$0xff] 0.0
      %44 = vst [vmem:[#allocation6 + $0x40] sm:$0xff] 0.0
      %45 = vst [vmem:[#allocation6 + $0x48] sm:$0xff] 0.0
      %46 = vst [vmem:[#allocation6 + $0x50] sm:$0xff] 0.0
      %47 = vst [vmem:[#allocation6 + $0x58] sm:$0xff] 0.0
      %48 = vst [vmem:[#allocation6 + $0x60] sm:$0xff] 0.0
      %49 = vst [vmem:[#allocation6 + $0x68] sm:$0xff] 0.0
      %50 = vst [vmem:[#allocation6 + $0x70] sm:$0xff] 0.0
      %51 = vst [vmem:[#allocation6 + $0x78] sm:$0xff] 0.0
      %vm52 = vcmask 7168
      %53 = vst.msk [vmem:[#allocation2] sm:$0xff] %vm52, 0.0
      %54 = vst.msk [vmem:[#allocation2 + $0x8] sm:$0xff] %vm52, 0.0
      %55 = vst.msk [vmem:[#allocation2 + $0x10] sm:$0xff] %vm52, 0.0
      %56 = vst.msk [vmem:[#allocation2 + $0x18] sm:$0xff] %vm52, 0.0
      %57 = vst.msk [vmem:[#allocation2 + $0x20] sm:$0xff] %vm52, 0.0
      %58 = vst.msk [vmem:[#allocation2 + $0x28] sm:$0xff] %vm52, 0.0
      %59 = vst.msk [vmem:[#allocation2 + $0x30] sm:$0xff] %vm52, 0.0
      %60 = vst.msk [vmem:[#allocation2 + $0x38] sm:$0xff] %vm52, 0.0
      %61 = vst.msk [vmem:[#allocation2 + $0x40] sm:$0xff] %vm52, 0.0
      %62 = vst.msk [vmem:[#allocation2 + $0x48] sm:$0xff] %vm52, 0.0
      %63 = vst.msk [vmem:[#allocation2 + $0x50] sm:$0xff] %vm52, 0.0
      %64 = vst.msk [vmem:[#allocation2 + $0x58] sm:$0xff] %vm52, 0.0
      %65 = vst.msk [vmem:[#allocation2 + $0x60] sm:$0xff] %vm52, 0.0
      %66 = vst.msk [vmem:[#allocation2 + $0x68] sm:$0xff] %vm52, 0.0
      %67 = vst.msk [vmem:[#allocation2 + $0x70] sm:$0xff] %vm52, 0.0
      %68 = vst.msk [vmem:[#allocation2 + $0x78] sm:$0xff] %vm52, 0.0
    $region25: #{tpu_custom_call.1} parent=1 // pred_fallthru
      _
    %v69 = vld [vmem:[#allocation3] sm:$0xff]
    %v70 = vld [vmem:[#allocation3 + $0x8] sm:$0xff]
    %v71 = vld [vmem:[#allocation3 + $0x10] sm:$0xff]
    %v72 = vld [vmem:[#allocation3 + $0x18] sm:$0xff]
    %v73 = vunpack.c.0.s8 %v69
    %v74 = vunpack.c.1.s8 %v69
    %v75 = vunpack.c.2.s8 %v69
    %v76 = vunpack.c.3.s8 %v69
    %v77 = vunpack.c.0.s8 %v70
    %v78 = vunpack.c.1.s8 %v70
    %v79 = vunpack.c.2.s8 %v70
    %v80 = vunpack.c.3.s8 %v70
    %v81 = vunpack.c.0.s8 %v71
    %v82 = vunpack.c.1.s8 %v71
    %v83 = vunpack.c.2.s8 %v71
    %v84 = vunpack.c.3.s8 %v71
    %v85 = vunpack.c.0.s8 %v72
    %v86 = vunpack.c.1.s8 %v72
    %v87 = vunpack.c.2.s8 %v72
    %v88 = vunpack.c.3.s8 %v72
    %v89 = vcvt.s32.f32 %v73
    %v90 = vcvt.s32.f32 %v74
    %v91 = vcvt.s32.f32 %v75
    %v92 = vcvt.s32.f32 %v76
    %v93 = vcvt.s32.f32 %v77
    %v94 = vcvt.s32.f32 %v78
    %v95 = vcvt.s32.f32 %v79
    %v96 = vcvt.s32.f32 %v80
    %v97 = vcvt.s32.f32 %v81
    %v98 = vcvt.s32.f32 %v82
    %v99 = vcvt.s32.f32 %v83
    %v100 = vcvt.s32.f32 %v84
    %v101 = vcvt.s32.f32 %v85
    %v102 = vcvt.s32.f32 %v86
    %v103 = vcvt.s32.f32 %v87
    %v104 = vcvt.s32.f32 %v88
    %v105 = vld [vmem:[%s0] sm:$0xff]
    %v106 = vld [vmem:[%s0 + $0x8] sm:$0xff]
    %v107 = vld [vmem:[%s0 + $0x10] sm:$0xff]
    %v108 = vld [vmem:[%s0 + $0x18] sm:$0xff]
    %v109 = vld [vmem:[%s0 + $0x20] sm:$0xff]
    %v110 = vld [vmem:[%s0 + $0x28] sm:$0xff]
    %v111 = vld [vmem:[%s0 + $0x30] sm:$0xff]
    %v112 = vld [vmem:[%s0 + $0x38] sm:$0xff]
    %v113 = vld [vmem:[%s0 + $0x40] sm:$0xff]
    %v114 = vld [vmem:[%s0 + $0x48] sm:$0xff]
    %v115 = vld [vmem:[%s0 + $0x50] sm:$0xff]
    %v116 = vld [vmem:[%s0 + $0x58] sm:$0xff]
    %v117 = vld [vmem:[%s0 + $0x60] sm:$0xff]
    %v118 = vld [vmem:[%s0 + $0x68] sm:$0xff]
    %v119 = vld [vmem:[%s0 + $0x70] sm:$0xff]
    %v120 = vld [vmem:[%s0 + $0x78] sm:$0xff]
    %v121 = vld [vmem:[%s1] sm:$0x7]
    %123 = vset.pattern.permute.xlu0 0
    %124 = vperm.xlu0 %123, %v105
    %v125 = vpop.permute.xlu0 %124
    %128 = vset.pattern.permute.xlu0 0
    %129 = vperm.xlu0 %128, %v106
    %v130 = vpop.permute.xlu0 %129
    %133 = vset.pattern.permute.xlu0 0
    %134 = vperm.xlu0 %133, %v107
    %v135 = vpop.permute.xlu0 %134
    %138 = vset.pattern.permute.xlu0 0
    %139 = vperm.xlu0 %138, %v108
    %v140 = vpop.permute.xlu0 %139
    %143 = vset.pattern.permute.xlu0 0
    %144 = vperm.xlu0 %143, %v109
    %v145 = vpop.permute.xlu0 %144
    %148 = vset.pattern.permute.xlu0 0
    %149 = vperm.xlu0 %148, %v110
    %v150 = vpop.permute.xlu0 %149
    %153 = vset.pattern.permute.xlu0 0
    %154 = vperm.xlu0 %153, %v111
    %v155 = vpop.permute.xlu0 %154
    %158 = vset.pattern.permute.xlu0 0
    %159 = vperm.xlu0 %158, %v112
    %v160 = vpop.permute.xlu0 %159
    %163 = vset.pattern.permute.xlu0 0
    %164 = vperm.xlu0 %163, %v113
    %v165 = vpop.permute.xlu0 %164
    %168 = vset.pattern.permute.xlu0 0
    %169 = vperm.xlu0 %168, %v114
    %v170 = vpop.permute.xlu0 %169
    %173 = vset.pattern.permute.xlu0 0
    %174 = vperm.xlu0 %173, %v115
    %v175 = vpop.permute.xlu0 %174
    %178 = vset.pattern.permute.xlu0 0
    %179 = vperm.xlu0 %178, %v116
    %v180 = vpop.permute.xlu0 %179
    %183 = vset.pattern.permute.xlu0 0
    %184 = vperm.xlu0 %183, %v117
    %v185 = vpop.permute.xlu0 %184
    %188 = vset.pattern.permute.xlu0 0
    %189 = vperm.xlu0 %188, %v118
    %v190 = vpop.permute.xlu0 %189
    %193 = vset.pattern.permute.xlu0 0
    %194 = vperm.xlu0 %193, %v119
    %v195 = vpop.permute.xlu0 %194
    %198 = vset.pattern.permute.xlu0 0
    %199 = vperm.xlu0 %198, %v120
    %v200 = vpop.permute.xlu0 %199
    %v202 = vlaneseq
    %v203 = vshrl.u32 %v202, 7
    %v204 = vsub.s32 0, %v203
    %v205 = vrot.slane %v121, %v204
    %v206 = vmul.f32 %v125, %v205
    %v207 = vmul.f32 %v130, %v205
    %v208 = vmul.f32 %v135, %v205
    %v209 = vmul.f32 %v140, %v205
    %v210 = vmul.f32 %v145, %v205
    %v211 = vmul.f32 %v150, %v205
    %v212 = vmul.f32 %v155, %v205
    %v213 = vmul.f32 %v160, %v205
    %v214 = vmul.f32 %v165, %v205
    %v215 = vmul.f32 %v170, %v205
    %v216 = vmul.f32 %v175, %v205
    %v217 = vmul.f32 %v180, %v205
    %v218 = vmul.f32 %v185, %v205
    %v219 = vmul.f32 %v190, %v205
    %v220 = vmul.f32 %v195, %v205
    %v221 = vmul.f32 %v200, %v205
    %222 = vset.pattern.permute.xlu0 1
    %223 = vperm.xlu0 %222, %v105
    %v224 = vpop.permute.xlu0 %223
    %226 = vset.pattern.permute.xlu0 1
    %227 = vperm.xlu0 %226, %v106
    %v228 = vpop.permute.xlu0 %227
    %230 = vset.pattern.permute.xlu0 1
    %231 = vperm.xlu0 %230, %v107
    %v232 = vpop.permute.xlu0 %231
    %234 = vset.pattern.permute.xlu0 1
    %235 = vperm.xlu0 %234, %v108
    %v236 = vpop.permute.xlu0 %235
    %238 = vset.pattern.permute.xlu0 1
    %239 = vperm.xlu0 %238, %v109
    %v240 = vpop.permute.xlu0 %239
    %242 = vset.pattern.permute.xlu0 1
    %243 = vperm.xlu0 %242, %v110
    %v244 = vpop.permute.xlu0 %243
    %246 = vset.pattern.permute.xlu0 1
    %247 = vperm.xlu0 %246, %v111
    %v248 = vpop.permute.xlu0 %247
    %250 = vset.pattern.permute.xlu0 1
    %251 = vperm.xlu0 %250, %v112
    %v252 = vpop.permute.xlu0 %251
    %254 = vset.pattern.permute.xlu0 1
    %255 = vperm.xlu0 %254, %v113
    %v256 = vpop.permute.xlu0 %255
    %258 = vset.pattern.permute.xlu0 1
    %259 = vperm.xlu0 %258, %v114
    %v260 = vpop.permute.xlu0 %259
    %262 = vset.pattern.permute.xlu0 1
    %263 = vperm.xlu0 %262, %v115
    %v264 = vpop.permute.xlu0 %263
    %266 = vset.pattern.permute.xlu0 1
    %267 = vperm.xlu0 %266, %v116
    %v268 = vpop.permute.xlu0 %267
    %270 = vset.pattern.permute.xlu0 1
    %271 = vperm.xlu0 %270, %v117
    %v272 = vpop.permute.xlu0 %271
    %274 = vset.pattern.permute.xlu0 1
    %275 = vperm.xlu0 %274, %v118
    %v276 = vpop.permute.xlu0 %275
    %278 = vset.pattern.permute.xlu0 1
    %279 = vperm.xlu0 %278, %v119
    %v280 = vpop.permute.xlu0 %279
    %282 = vset.pattern.permute.xlu0 1
    %283 = vperm.xlu0 %282, %v120
    %v284 = vpop.permute.xlu0 %283
    %v286 = vlaneseq
    %v287 = vshrl.u32 %v286, 7
    %v288 = vsub.s32 1, %v287
    %v289 = vrot.slane %v121, %v288
    %v290 = vmul.f32 %v224, %v289
    %v291 = vmul.f32 %v228, %v289
    %v292 = vmul.f32 %v232, %v289
    %v293 = vmul.f32 %v236, %v289
    %v294 = vmul.f32 %v240, %v289
    %v295 = vmul.f32 %v244, %v289
    %v296 = vmul.f32 %v248, %v289
    %v297 = vmul.f32 %v252, %v289
    %v298 = vmul.f32 %v256, %v289
    %v299 = vmul.f32 %v260, %v289
    %v300 = vmul.f32 %v264, %v289
    %v301 = vmul.f32 %v268, %v289
    %v302 = vmul.f32 %v272, %v289
    %v303 = vmul.f32 %v276, %v289
    %v304 = vmul.f32 %v280, %v289
    %v305 = vmul.f32 %v284, %v289
    %v306 = vadd.f32 %v206, %v290
    %v307 = vadd.f32 %v207, %v291
    %v308 = vadd.f32 %v208, %v292
    %v309 = vadd.f32 %v209, %v293
    %v310 = vadd.f32 %v210, %v294
    %v311 = vadd.f32 %v211, %v295
    %v312 = vadd.f32 %v212, %v296
    %v313 = vadd.f32 %v213, %v297
    %v314 = vadd.f32 %v214, %v298
    %v315 = vadd.f32 %v215, %v299
    %v316 = vadd.f32 %v216, %v300
    %v317 = vadd.f32 %v217, %v301
    %v318 = vadd.f32 %v218, %v302
    %v319 = vadd.f32 %v219, %v303
    %v320 = vadd.f32 %v220, %v304
    %v321 = vadd.f32 %v221, %v305
    %322 = vset.pattern.permute.xlu0 2
    %323 = vperm.xlu0 %322, %v105
    %v324 = vpop.permute.xlu0 %323
    %326 = vset.pattern.permute.xlu0 2
    %327 = vperm.xlu0 %326, %v106
    %v328 = vpop.permute.xlu0 %327
    %330 = vset.pattern.permute.xlu0 2
    %331 = vperm.xlu0 %330, %v107
    %v332 = vpop.permute.xlu0 %331
    %334 = vset.pattern.permute.xlu0 2
    %335 = vperm.xlu0 %334, %v108
    %v336 = vpop.permute.xlu0 %335
    %338 = vset.pattern.permute.xlu0 2
    %339 = vperm.xlu0 %338, %v109
    %v340 = vpop.permute.xlu0 %339
    %342 = vset.pattern.permute.xlu0 2
    %343 = vperm.xlu0 %342, %v110
    %v344 = vpop.permute.xlu0 %343
    %346 = vset.pattern.permute.xlu0 2
    %347 = vperm.xlu0 %346, %v111
    %v348 = vpop.permute.xlu0 %347
    %350 = vset.pattern.permute.xlu0 2
    %351 = vperm.xlu0 %350, %v112
    %v352 = vpop.permute.xlu0 %351
    %354 = vset.pattern.permute.xlu0 2
    %355 = vperm.xlu0 %354, %v113
    %v356 = vpop.permute.xlu0 %355
    %358 = vset.pattern.permute.xlu0 2
    %359 = vperm.xlu0 %358, %v114
    %v360 = vpop.permute.xlu0 %359
    %362 = vset.pattern.permute.xlu0 2
    %363 = vperm.xlu0 %362, %v115
    %v364 = vpop.permute.xlu0 %363
    %366 = vset.pattern.permute.xlu0 2
    %367 = vperm.xlu0 %366, %v116
    %v368 = vpop.permute.xlu0 %367
    %370 = vset.pattern.permute.xlu0 2
    %371 = vperm.xlu0 %370, %v117
    %v372 = vpop.permute.xlu0 %371
    %374 = vset.pattern.permute.xlu0 2
    %375 = vperm.xlu0 %374, %v118
    %v376 = vpop.permute.xlu0 %375
    %378 = vset.pattern.permute.xlu0 2
    %379 = vperm.xlu0 %378, %v119
    %v380 = vpop.permute.xlu0 %379
    %382 = vset.pattern.permute.xlu0 2
    %383 = vperm.xlu0 %382, %v120
    %v384 = vpop.permute.xlu0 %383
    %v386 = vlaneseq
    %v387 = vshrl.u32 %v386, 7
    %v388 = vsub.s32 2, %v387
    %v389 = vrot.slane %v121, %v388
    %v390 = vmul.f32 %v324, %v389
    %v391 = vmul.f32 %v328, %v389
    %v392 = vmul.f32 %v332, %v389
    %v393 = vmul.f32 %v336, %v389
    %v394 = vmul.f32 %v340, %v389
    %v395 = vmul.f32 %v344, %v389
    %v396 = vmul.f32 %v348, %v389
    %v397 = vmul.f32 %v352, %v389
    %v398 = vmul.f32 %v356, %v389
    %v399 = vmul.f32 %v360, %v389
    %v400 = vmul.f32 %v364, %v389
    %v401 = vmul.f32 %v368, %v389
    %v402 = vmul.f32 %v372, %v389
    %v403 = vmul.f32 %v376, %v389
    %v404 = vmul.f32 %v380, %v389
    %v405 = vmul.f32 %v384, %v389
    %v406 = vadd.f32 %v306, %v390
    %v407 = vadd.f32 %v307, %v391
    %v408 = vadd.f32 %v308, %v392
    %v409 = vadd.f32 %v309, %v393
    %v410 = vadd.f32 %v310, %v394
    %v411 = vadd.f32 %v311, %v395
    %v412 = vadd.f32 %v312, %v396
    %v413 = vadd.f32 %v313, %v397
    %v414 = vadd.f32 %v314, %v398
    %v415 = vadd.f32 %v315, %v399
    %v416 = vadd.f32 %v316, %v400
    %v417 = vadd.f32 %v317, %v401
    %v418 = vadd.f32 %v318, %v402
    %v419 = vadd.f32 %v319, %v403
    %v420 = vadd.f32 %v320, %v404
    %v421 = vadd.f32 %v321, %v405
    %v422 = vld [vmem:[#allocation2] sm:$0xff]
    %v423 = vld [vmem:[#allocation2 + $0x8] sm:$0xff]
    %v424 = vld [vmem:[#allocation2 + $0x10] sm:$0xff]
    %v425 = vld [vmem:[#allocation2 + $0x18] sm:$0xff]
    %v426 = vld [vmem:[#allocation2 + $0x20] sm:$0xff]
    %v427 = vld [vmem:[#allocation2 + $0x28] sm:$0xff]
    %v428 = vld [vmem:[#allocation2 + $0x30] sm:$0xff]
    %v429 = vld [vmem:[#allocation2 + $0x38] sm:$0xff]
    %v430 = vld [vmem:[#allocation2 + $0x40] sm:$0xff]
    %v431 = vld [vmem:[#allocation2 + $0x48] sm:$0xff]
    %v432 = vld [vmem:[#allocation2 + $0x50] sm:$0xff]
    %v433 = vld [vmem:[#allocation2 + $0x58] sm:$0xff]
    %v434 = vld [vmem:[#allocation2 + $0x60] sm:$0xff]
    %v435 = vld [vmem:[#allocation2 + $0x68] sm:$0xff]
    %v436 = vld [vmem:[#allocation2 + $0x70] sm:$0xff]
    %v437 = vld [vmem:[#allocation2 + $0x78] sm:$0xff]
    %438 = vadd.xlane.f32.xlu0 %v89
    %v439 = vpop.xlane.xlu0 %438
    %440 = vadd.xlane.f32.xlu0 %v90
    %v441 = vpop.xlane.xlu0 %440
    %442 = vadd.xlane.f32.xlu0 %v91
    %v443 = vpop.xlane.xlu0 %442
    %444 = vadd.xlane.f32.xlu0 %v92
    %v445 = vpop.xlane.xlu0 %444
    %446 = vadd.xlane.f32.xlu0 %v93
    %v447 = vpop.xlane.xlu0 %446
    %448 = vadd.xlane.f32.xlu0 %v94
    %v449 = vpop.xlane.xlu0 %448
    %450 = vadd.xlane.f32.xlu0 %v95
    %v451 = vpop.xlane.xlu0 %450
    %452 = vadd.xlane.f32.xlu0 %v96
    %v453 = vpop.xlane.xlu0 %452
    %454 = vadd.xlane.f32.xlu0 %v97
    %v455 = vpop.xlane.xlu0 %454
    %456 = vadd.xlane.f32.xlu0 %v98
    %v457 = vpop.xlane.xlu0 %456
    %458 = vadd.xlane.f32.xlu0 %v99
    %v459 = vpop.xlane.xlu0 %458
    %460 = vadd.xlane.f32.xlu0 %v100
    %v461 = vpop.xlane.xlu0 %460
    %462 = vadd.xlane.f32.xlu0 %v101
    %v463 = vpop.xlane.xlu0 %462
    %464 = vadd.xlane.f32.xlu0 %v102
    %v465 = vpop.xlane.xlu0 %464
    %466 = vadd.xlane.f32.xlu0 %v103
    %v467 = vpop.xlane.xlu0 %466
    %468 = vadd.xlane.f32.xlu0 %v104
    %v469 = vpop.xlane.xlu0 %468
    %v470 = vadd.f32 %v422, %v439
    %v471 = vadd.f32 %v423, %v441
    %v472 = vadd.f32 %v424, %v443
    %v473 = vadd.f32 %v425, %v445
    %v474 = vadd.f32 %v426, %v447
    %v475 = vadd.f32 %v427, %v449
    %v476 = vadd.f32 %v428, %v451
    %v477 = vadd.f32 %v429, %v453
    %v478 = vadd.f32 %v430, %v455
    %v479 = vadd.f32 %v431, %v457
    %v480 = vadd.f32 %v432, %v459
    %v481 = vadd.f32 %v433, %v461
    %v482 = vadd.f32 %v434, %v463
    %v483 = vadd.f32 %v435, %v465
    %v484 = vadd.f32 %v436, %v467
    %v485 = vadd.f32 %v437, %v469
    %vm486 = vcmask 7168
    %487 = vst.msk [vmem:[#allocation2] sm:$0xff] %vm486, %v470
    %488 = vst.msk [vmem:[#allocation2 + $0x8] sm:$0xff] %vm486, %v471
    %489 = vst.msk [vmem:[#allocation2 + $0x10] sm:$0xff] %vm486, %v472
    %490 = vst.msk [vmem:[#allocation2 + $0x18] sm:$0xff] %vm486, %v473
    %491 = vst.msk [vmem:[#allocation2 + $0x20] sm:$0xff] %vm486, %v474
    %492 = vst.msk [vmem:[#allocation2 + $0x28] sm:$0xff] %vm486, %v475
    %493 = vst.msk [vmem:[#allocation2 + $0x30] sm:$0xff] %vm486, %v476
    %494 = vst.msk [vmem:[#allocation2 + $0x38] sm:$0xff] %vm486, %v477
    %495 = vst.msk [vmem:[#allocation2 + $0x40] sm:$0xff] %vm486, %v478
    %496 = vst.msk [vmem:[#allocation2 + $0x48] sm:$0xff] %vm486, %v479
    %497 = vst.msk [vmem:[#allocation2 + $0x50] sm:$0xff] %vm486, %v480
    %498 = vst.msk [vmem:[#allocation2 + $0x58] sm:$0xff] %vm486, %v481
    %499 = vst.msk [vmem:[#allocation2 + $0x60] sm:$0xff] %vm486, %v482
    %500 = vst.msk [vmem:[#allocation2 + $0x68] sm:$0xff] %vm486, %v483
    %501 = vst.msk [vmem:[#allocation2 + $0x70] sm:$0xff] %vm486, %v484
    %502 = vst.msk [vmem:[#allocation2 + $0x78] sm:$0xff] %vm486, %v485
    %v503 = vld [vmem:[#allocation6] sm:$0xff]
    %v504 = vld [vmem:[#allocation6 + $0x8] sm:$0xff]
    %v505 = vld [vmem:[#allocation6 + $0x10] sm:$0xff]
    %v506 = vld [vmem:[#allocation6 + $0x18] sm:$0xff]
    %v507 = vld [vmem:[#allocation6 + $0x20] sm:$0xff]
    %v508 = vld [vmem:[#allocation6 + $0x28] sm:$0xff]
    %v509 = vld [vmem:[#allocation6 + $0x30] sm:$0xff]
    %v510 = vld [vmem:[#allocation6 + $0x38] sm:$0xff]
    %v511 = vld [vmem:[#allocation6 + $0x40] sm:$0xff]
    %v512 = vld [vmem:[#allocation6 + $0x48] sm:$0xff]
    %v513 = vld [vmem:[#allocation6 + $0x50] sm:$0xff]
    %v514 = vld [vmem:[#allocation6 + $0x58] sm:$0xff]
    %v515 = vld [vmem:[#allocation6 + $0x60] sm:$0xff]
    %v516 = vld [vmem:[#allocation6 + $0x68] sm:$0xff]
    %v517 = vld [vmem:[#allocation6 + $0x70] sm:$0xff]
    %v518 = vld [vmem:[#allocation6 + $0x78] sm:$0xff]
    %v519 = vmul.f32 %v89, %v406
    %v520 = vmul.f32 %v90, %v407
    %v521 = vmul.f32 %v91, %v408
    %v522 = vmul.f32 %v92, %v409
    %v523 = vmul.f32 %v93, %v410
    %v524 = vmul.f32 %v94, %v411
    %v525 = vmul.f32 %v95, %v412
    %v526 = vmul.f32 %v96, %v413
    %v527 = vmul.f32 %v97, %v414
    %v528 = vmul.f32 %v98, %v415
    %v529 = vmul.f32 %v99, %v416
    %v530 = vmul.f32 %v100, %v417
    %v531 = vmul.f32 %v101, %v418
    %v532 = vmul.f32 %v102, %v419
    %v533 = vmul.f32 %v103, %v420
    %v534 = vmul.f32 %v104, %v421
    %v535 = vld [vmem:[%s2] sm:$0xff]
    %v536 = vld [vmem:[%s2 + $0x8] sm:$0xff]
    %v537 = vld [vmem:[%s2 + $0x10] sm:$0xff]
    %v538 = vld [vmem:[%s2 + $0x18] sm:$0xff]
    %v539 = vld [vmem:[%s2 + $0x20] sm:$0xff]
    %v540 = vld [vmem:[%s2 + $0x28] sm:$0xff]
    %v541 = vld [vmem:[%s2 + $0x30] sm:$0xff]
    %v542 = vld [vmem:[%s2 + $0x38] sm:$0xff]
    %v543 = vld [vmem:[%s2 + $0x40] sm:$0xff]
    %v544 = vld [vmem:[%s2 + $0x48] sm:$0xff]
    %v545 = vld [vmem:[%s2 + $0x50] sm:$0xff]
    %v546 = vld [vmem:[%s2 + $0x58] sm:$0xff]
    %v547 = vld [vmem:[%s2 + $0x60] sm:$0xff]
    %v548 = vld [vmem:[%s2 + $0x68] sm:$0xff]
    %v549 = vld [vmem:[%s2 + $0x70] sm:$0xff]
    %v550 = vld [vmem:[%s2 + $0x78] sm:$0xff]
    %551 = vmatprep.subr.mxu0 0.0
    %552 = vmatpush1.msra.mxu0 %v535
    %553 = vmatprep.subr.mxu0 0.0
    %554 = vmatpush1.msra.mxu0 %v536
    %555 = vmatprep.subr.mxu0 0.0
    %556 = vmatpush1.msra.mxu0 %v537
    %557 = vmatprep.subr.mxu0 0.0
    %558 = vmatpush1.msra.mxu0 %v538
    %559 = vmatprep.subr.mxu0 0.0
    %560 = vmatpush1.msra.mxu0 %v539
    %561 = vmatprep.subr.mxu0 0.0
    %562 = vmatpush1.msra.mxu0 %v540
    %563 = vmatprep.subr.mxu0 0.0
    %564 = vmatpush1.msra.mxu0 %v541
    %565 = vmatprep.subr.mxu0 0.0
    %566 = vmatpush1.msra.mxu0 %v542
    %567 = vmatprep.subr.mxu0 0.0
    %568 = vmatpush1.msra.mxu0 %v543
    %569 = vmatprep.subr.mxu0 0.0
    %570 = vmatpush1.msra.mxu0 %v544
    %571 = vmatprep.subr.mxu0 0.0
    %572 = vmatpush1.msra.mxu0 %v545
    %573 = vmatprep.subr.mxu0 0.0
    %574 = vmatpush1.msra.mxu0 %v546
    %575 = vmatprep.subr.mxu0 0.0
    %576 = vmatpush1.msra.mxu0 %v547
    %577 = vmatprep.subr.mxu0 0.0
    %578 = vmatpush1.msra.mxu0 %v548
    %579 = vmatprep.subr.mxu0 0.0
    %580 = vmatpush1.msra.mxu0 %v549
    %581 = vmatprep.subr.mxu0 0.0
    %582 = vmatpush1.msra.mxu0 %v550
    %583 = vmatprep.subr.mxu0 0.0
    %584 = vmatpush1.msra.mxu0 0.0
    %585 = vmatprep.subr.mxu0 0.0
    %586 = vmatpush1.msra.mxu0 0.0
    %587 = vmatprep.subr.mxu0 0.0
    %588 = vmatpush1.msra.mxu0 0.0
    %589 = vmatprep.subr.mxu0 0.0
    %590 = vmatpush1.msra.mxu0 0.0
    %591 = vmatprep.subr.mxu0 0.0
    %592 = vmatpush1.msra.mxu0 0.0
    %593 = vmatprep.subr.mxu0 0.0
    %594 = vmatpush1.msra.mxu0 0.0
    %595 = vmatprep.subr.mxu0 0.0
    %596 = vmatpush1.msra.mxu0 0.0
    %597 = vmatprep.subr.mxu0 0.0
    %598 = vmatpush1.msra.mxu0 0.0
    %599 = vmatprep.subr.mxu0 0.0
    %600 = vmatpush1.msra.mxu0 0.0
    %601 = vmatprep.subr.mxu0 0.0
    %602 = vmatpush1.msra.mxu0 0.0
    %603 = vmatprep.subr.mxu0 0.0
    %604 = vmatpush1.msra.mxu0 0.0
    %605 = vmatprep.subr.mxu0 0.0
    %606 = vmatpush1.msra.mxu0 0.0
    %607 = vmatprep.subr.mxu0 0.0
    %608 = vmatpush1.msra.mxu0 0.0
    %609 = vmatprep.subr.mxu0 0.0
    %610 = vmatpush1.msra.mxu0 0.0
    %611 = vmatprep.subr.mxu0 0.0
    %612 = vmatpush1.msra.mxu0 0.0
    %613 = vmatprep.subr.mxu0 0.0
    %614 = vmatpush1.msra.mxu0 0.0
    %615 = vmatprep.mubr.f32.mxu0 0.0
    %616 = vmatmul.mubr.f32.gmra.mrb[0].mxu0 %v519
    %v617 = vpop.f32.mrb[0].mxu0
    %v618 = vadd.f32 0.0, %v617
    %v619 = vpop.f32.mrb[0].mxu0
    %620 = vmatprep.mubr.f32.mxu0 0.0
    %621 = vmatmul.mubr.f32.gmra.mrb[0].mxu0 %v520
    %v622 = vpop.f32.mrb[0].mxu0
    %v623 = vadd.f32 0.0, %v622
    %v624 = vpop.f32.mrb[0].mxu0
    %625 = vmatprep.mubr.f32.mxu0 0.0
    %626 = vmatmul.mubr.f32.gmra.mrb[0].mxu0 %v521
    %v627 = vpop.f32.mrb[0].mxu0
    %v628 = vadd.f32 0.0, %v627
    %v629 = vpop.f32.mrb[0].mxu0
    %630 = vmatprep.mubr.f32.mxu0 0.0
    %631 = vmatmul.mubr.f32.gmra.mrb[0].mxu0 %v522
    %v632 = vpop.f32.mrb[0].mxu0
    %v633 = vadd.f32 0.0, %v632
    %v634 = vpop.f32.mrb[0].mxu0
    %635 = vmatprep.mubr.f32.mxu0 0.0
    %636 = vmatmul.mubr.f32.gmra.mrb[0].mxu0 %v523
    %v637 = vpop.f32.mrb[0].mxu0
    %v638 = vadd.f32 0.0, %v637
    %v639 = vpop.f32.mrb[0].mxu0
    %640 = vmatprep.mubr.f32.mxu0 0.0
    %641 = vmatmul.mubr.f32.gmra.mrb[0].mxu0 %v524
    %v642 = vpop.f32.mrb[0].mxu0
    %v643 = vadd.f32 0.0, %v642
    %v644 = vpop.f32.mrb[0].mxu0
    %645 = vmatprep.mubr.f32.mxu0 0.0
    %646 = vmatmul.mubr.f32.gmra.mrb[0].mxu0 %v525
    %v647 = vpop.f32.mrb[0].mxu0
    %v648 = vadd.f32 0.0, %v647
    %v649 = vpop.f32.mrb[0].mxu0
    %650 = vmatprep.mubr.f32.mxu0 0.0
    %651 = vmatmul.mubr.f32.gmra.mrb[0].mxu0 %v526
    %v652 = vpop.f32.mrb[0].mxu0
    %v653 = vadd.f32 0.0, %v652
    %v654 = vpop.f32.mrb[0].mxu0
    %655 = vmatprep.mubr.f32.mxu0 0.0
    %656 = vmatmul.mubr.f32.gmra.mrb[0].mxu0 %v527
    %v657 = vpop.f32.mrb[0].mxu0
    %v658 = vadd.f32 0.0, %v657
    %v659 = vpop.f32.mrb[0].mxu0
    %660 = vmatprep.mubr.f32.mxu0 0.0
    %661 = vmatmul.mubr.f32.gmra.mrb[0].mxu0 %v528
    %v662 = vpop.f32.mrb[0].mxu0
    %v663 = vadd.f32 0.0, %v662
    %v664 = vpop.f32.mrb[0].mxu0
    %665 = vmatprep.mubr.f32.mxu0 0.0
    %666 = vmatmul.mubr.f32.gmra.mrb[0].mxu0 %v529
    %v667 = vpop.f32.mrb[0].mxu0
    %v668 = vadd.f32 0.0, %v667
    %v669 = vpop.f32.mrb[0].mxu0
    %670 = vmatprep.mubr.f32.mxu0 0.0
    %671 = vmatmul.mubr.f32.gmra.mrb[0].mxu0 %v530
    %v672 = vpop.f32.mrb[0].mxu0
    %v673 = vadd.f32 0.0, %v672
    %v674 = vpop.f32.mrb[0].mxu0
    %675 = vmatprep.mubr.f32.mxu0 0.0
    %676 = vmatmul.mubr.f32.gmra.mrb[0].mxu0 %v531
    %v677 = vpop.f32.mrb[0].mxu0
    %v678 = vadd.f32 0.0, %v677
    %v679 = vpop.f32.mrb[0].mxu0
    %680 = vmatprep.mubr.f32.mxu0 0.0
    %681 = vmatmul.mubr.f32.gmra.mrb[0].mxu0 %v532
    %v682 = vpop.f32.mrb[0].mxu0
    %v683 = vadd.f32 0.0, %v682
    %v684 = vpop.f32.mrb[0].mxu0
    %685 = vmatprep.mubr.f32.mxu0 0.0
    %686 = vmatmul.mubr.f32.gmra.mrb[0].mxu0 %v533
    %v687 = vpop.f32.mrb[0].mxu0
    %v688 = vadd.f32 0.0, %v687
    %v689 = vpop.f32.mrb[0].mxu0
    %690 = vmatprep.mubr.f32.mxu0 0.0
    %691 = vmatmul.mubr.f32.gmra.mrb[0].mxu0 %v534
    %v692 = vpop.f32.mrb[0].mxu0
    %v693 = vadd.f32 0.0, %v692
    %v694 = vpop.f32.mrb[0].mxu0
    %695 = vdwg.mxu0
    %v696 = vadd.f32 %v503, %v618
    %v697 = vadd.f32 %v504, %v623
    %v698 = vadd.f32 %v505, %v628
    %v699 = vadd.f32 %v506, %v633
    %v700 = vadd.f32 %v507, %v638
    %v701 = vadd.f32 %v508, %v643
    %v702 = vadd.f32 %v509, %v648
    %v703 = vadd.f32 %v510, %v653
    %v704 = vadd.f32 %v511, %v658
    %v705 = vadd.f32 %v512, %v663
    %v706 = vadd.f32 %v513, %v668
    %v707 = vadd.f32 %v514, %v673
    %v708 = vadd.f32 %v515, %v678
    %v709 = vadd.f32 %v516, %v683
    %v710 = vadd.f32 %v517, %v688
    %v711 = vadd.f32 %v518, %v693
    %712 = vst [vmem:[#allocation6] sm:$0xff] %v696
    %713 = vst [vmem:[#allocation6 + $0x8] sm:$0xff] %v697
    %714 = vst [vmem:[#allocation6 + $0x10] sm:$0xff] %v698
    %715 = vst [vmem:[#allocation6 + $0x18] sm:$0xff] %v699
    %716 = vst [vmem:[#allocation6 + $0x20] sm:$0xff] %v700
    %717 = vst [vmem:[#allocation6 + $0x28] sm:$0xff] %v701
    %718 = vst [vmem:[#allocation6 + $0x30] sm:$0xff] %v702
    %719 = vst [vmem:[#allocation6 + $0x38] sm:$0xff] %v703
    %720 = vst [vmem:[#allocation6 + $0x40] sm:$0xff] %v704
    %721 = vst [vmem:[#allocation6 + $0x48] sm:$0xff] %v705
    %722 = vst [vmem:[#allocation6 + $0x50] sm:$0xff] %v706
    %723 = vst [vmem:[#allocation6 + $0x58] sm:$0xff] %v707
    %724 = vst [vmem:[#allocation6 + $0x60] sm:$0xff] %v708
    %725 = vst [vmem:[#allocation6 + $0x68] sm:$0xff] %v709
    %726 = vst [vmem:[#allocation6 + $0x70] sm:$0xff] %v710
    %727 = vst [vmem:[#allocation6 + $0x78] sm:$0xff] %v711
    // Predicated region
    $region26: #{tpu_custom_call.1} parent=1 // pred_check
      %p728 = pneg %p32
    $region27: #{tpu_custom_call.1} parent=1 // pred_check_branch
      %730 = sbr.rel (%p728) target = $region29
    $region28: #{tpu_custom_call.1} parent=1 // pred_region
      %v731 = vld [vmem:[#allocation2] sm:$0xff]
      %v732 = vld [vmem:[#allocation2 + $0x8] sm:$0xff]
      %v733 = vld [vmem:[#allocation2 + $0x10] sm:$0xff]
      %v734 = vld [vmem:[#allocation2 + $0x18] sm:$0xff]
      %v735 = vld [vmem:[#allocation2 + $0x20] sm:$0xff]
      %v736 = vld [vmem:[#allocation2 + $0x28] sm:$0xff]
      %v737 = vld [vmem:[#allocation2 + $0x30] sm:$0xff]
      %v738 = vld [vmem:[#allocation2 + $0x38] sm:$0xff]
      %v739 = vld [vmem:[#allocation2 + $0x40] sm:$0xff]
      %v740 = vld [vmem:[#allocation2 + $0x48] sm:$0xff]
      %v741 = vld [vmem:[#allocation2 + $0x50] sm:$0xff]
      %v742 = vld [vmem:[#allocation2 + $0x58] sm:$0xff]
      %v743 = vld [vmem:[#allocation2 + $0x60] sm:$0xff]
      %v744 = vld [vmem:[#allocation2 + $0x68] sm:$0xff]
      %v745 = vld [vmem:[#allocation2 + $0x70] sm:$0xff]
      %v746 = vld [vmem:[#allocation2 + $0x78] sm:$0xff]
      %vm747 = vcmp.gt.f32.partialorder %v731, 0.0
      %vm748 = vcmp.gt.f32.partialorder %v732, 0.0
      %vm749 = vcmp.gt.f32.partialorder %v733, 0.0
      %vm750 = vcmp.gt.f32.partialorder %v734, 0.0
      %vm751 = vcmp.gt.f32.partialorder %v735, 0.0
      %vm752 = vcmp.gt.f32.partialorder %v736, 0.0
      %vm753 = vcmp.gt.f32.partialorder %v737, 0.0
      %vm754 = vcmp.gt.f32.partialorder %v738, 0.0
      %vm755 = vcmp.gt.f32.partialorder %v739, 0.0
      %vm756 = vcmp.gt.f32.partialorder %v740, 0.0
      %vm757 = vcmp.gt.f32.partialorder %v741, 0.0
      %vm758 = vcmp.gt.f32.partialorder %v742, 0.0
      %vm759 = vcmp.gt.f32.partialorder %v743, 0.0
      %vm760 = vcmp.gt.f32.partialorder %v744, 0.0
      %vm761 = vcmp.gt.f32.partialorder %v745, 0.0
      %vm762 = vcmp.gt.f32.partialorder %v746, 0.0
      %v763 = vrcp.pop %v731
      %v764 = vmul.f32 1.0, %v763
      %v765 = vrcp.pop %v732
      %v766 = vmul.f32 1.0, %v765
      %v767 = vrcp.pop %v733
      %v768 = vmul.f32 1.0, %v767
      %v769 = vrcp.pop %v734
      %v770 = vmul.f32 1.0, %v769
      %v771 = vrcp.pop %v735
      %v772 = vmul.f32 1.0, %v771
      %v773 = vrcp.pop %v736
      %v774 = vmul.f32 1.0, %v773
      %v775 = vrcp.pop %v737
      %v776 = vmul.f32 1.0, %v775
      %v777 = vrcp.pop %v738
      %v778 = vmul.f32 1.0, %v777
      %v779 = vrcp.pop %v739
      %v780 = vmul.f32 1.0, %v779
      %v781 = vrcp.pop %v740
      %v782 = vmul.f32 1.0, %v781
      %v783 = vrcp.pop %v741
      %v784 = vmul.f32 1.0, %v783
      %v785 = vrcp.pop %v742
      %v786 = vmul.f32 1.0, %v785
      %v787 = vrcp.pop %v743
      %v788 = vmul.f32 1.0, %v787
      %v789 = vrcp.pop %v744
      %v790 = vmul.f32 1.0, %v789
      %v791 = vrcp.pop %v745
      %v792 = vmul.f32 1.0, %v791
      %v793 = vrcp.pop %v746
      %v794 = vmul.f32 1.0, %v793
      %v795 = vsel %vm747, %v764, 0.0
      %v796 = vsel %vm748, %v766, 0.0
      %v797 = vsel %vm749, %v768, 0.0
      %v798 = vsel %vm750, %v770, 0.0
      %v799 = vsel %vm751, %v772, 0.0
      %v800 = vsel %vm752, %v774, 0.0
      %v801 = vsel %vm753, %v776, 0.0
      %v802 = vsel %vm754, %v778, 0.0
      %v803 = vsel %vm755, %v780, 0.0
      %v804 = vsel %vm756, %v782, 0.0
      %v805 = vsel %vm757, %v784, 0.0
      %v806 = vsel %vm758, %v786, 0.0
      %v807 = vsel %vm759, %v788, 0.0
      %v808 = vsel %vm760, %v790, 0.0
      %v809 = vsel %vm761, %v792, 0.0
      %v810 = vsel %vm762, %v794, 0.0
      %v811 = vld [vmem:[#allocation6] sm:$0xff]
      %v812 = vld [vmem:[#allocation6 + $0x8] sm:$0xff]
      %v813 = vld [vmem:[#allocation6 + $0x10] sm:$0xff]
      %v814 = vld [vmem:[#allocation6 + $0x18] sm:$0xff]
      %v815 = vld [vmem:[#allocation6 + $0x20] sm:$0xff]
      %v816 = vld [vmem:[#allocation6 + $0x28] sm:$0xff]
      %v817 = vld [vmem:[#allocation6 + $0x30] sm:$0xff]
      %v818 = vld [vmem:[#allocation6 + $0x38] sm:$0xff]
      %v819 = vld [vmem:[#allocation6 + $0x40] sm:$0xff]
      %v820 = vld [vmem:[#allocation6 + $0x48] sm:$0xff]
      %v821 = vld [vmem:[#allocation6 + $0x50] sm:$0xff]
      %v822 = vld [vmem:[#allocation6 + $0x58] sm:$0xff]
      %v823 = vld [vmem:[#allocation6 + $0x60] sm:$0xff]
      %v824 = vld [vmem:[#allocation6 + $0x68] sm:$0xff]
      %v825 = vld [vmem:[#allocation6 + $0x70] sm:$0xff]
      %v826 = vld [vmem:[#allocation6 + $0x78] sm:$0xff]
      %828 = vset.pattern.permute.xlu0 0
      %829 = vperm.xlu0 %828, %v795
      %v830 = vpop.permute.xlu0 %829
      %833 = vset.pattern.permute.xlu0 0
      %834 = vperm.xlu0 %833, %v796
      %v835 = vpop.permute.xlu0 %834
      %838 = vset.pattern.permute.xlu0 0
      %839 = vperm.xlu0 %838, %v797
      %v840 = vpop.permute.xlu0 %839
      %843 = vset.pattern.permute.xlu0 0
      %844 = vperm.xlu0 %843, %v798
      %v845 = vpop.permute.xlu0 %844
      %848 = vset.pattern.permute.xlu0 0
      %849 = vperm.xlu0 %848, %v799
      %v850 = vpop.permute.xlu0 %849
      %853 = vset.pattern.permute.xlu0 0
      %854 = vperm.xlu0 %853, %v800
      %v855 = vpop.permute.xlu0 %854
      %858 = vset.pattern.permute.xlu0 0
      %859 = vperm.xlu0 %858, %v801
      %v860 = vpop.permute.xlu0 %859
      %863 = vset.pattern.permute.xlu0 0
      %864 = vperm.xlu0 %863, %v802
      %v865 = vpop.permute.xlu0 %864
      %868 = vset.pattern.permute.xlu0 0
      %869 = vperm.xlu0 %868, %v803
      %v870 = vpop.permute.xlu0 %869
      %873 = vset.pattern.permute.xlu0 0
      %874 = vperm.xlu0 %873, %v804
      %v875 = vpop.permute.xlu0 %874
      %878 = vset.pattern.permute.xlu0 0
      %879 = vperm.xlu0 %878, %v805
      %v880 = vpop.permute.xlu0 %879
      %883 = vset.pattern.permute.xlu0 0
      %884 = vperm.xlu0 %883, %v806
      %v885 = vpop.permute.xlu0 %884
      %888 = vset.pattern.permute.xlu0 0
      %889 = vperm.xlu0 %888, %v807
      %v890 = vpop.permute.xlu0 %889
      %893 = vset.pattern.permute.xlu0 0
      %894 = vperm.xlu0 %893, %v808
      %v895 = vpop.permute.xlu0 %894
      %898 = vset.pattern.permute.xlu0 0
      %899 = vperm.xlu0 %898, %v809
      %v900 = vpop.permute.xlu0 %899
      %903 = vset.pattern.permute.xlu0 0
      %904 = vperm.xlu0 %903, %v810
      %v905 = vpop.permute.xlu0 %904
      %v907 = vmul.f32 %v811, %v830
      %v908 = vmul.f32 %v812, %v835
      %v909 = vmul.f32 %v813, %v840
      %v910 = vmul.f32 %v814, %v845
      %v911 = vmul.f32 %v815, %v850
      %v912 = vmul.f32 %v816, %v855
      %v913 = vmul.f32 %v817, %v860
      %v914 = vmul.f32 %v818, %v865
      %v915 = vmul.f32 %v819, %v870
      %v916 = vmul.f32 %v820, %v875
      %v917 = vmul.f32 %v821, %v880
      %v918 = vmul.f32 %v822, %v885
      %v919 = vmul.f32 %v823, %v890
      %v920 = vmul.f32 %v824, %v895
      %v921 = vmul.f32 %v825, %v900
      %v922 = vmul.f32 %v826, %v905
      %923 = vst [vmem:[#allocation6] sm:$0xff] %v907
      %924 = vst [vmem:[#allocation6 + $0x8] sm:$0xff] %v908
      %925 = vst [vmem:[#allocation6 + $0x10] sm:$0xff] %v909
      %926 = vst [vmem:[#allocation6 + $0x18] sm:$0xff] %v910
      %927 = vst [vmem:[#allocation6 + $0x20] sm:$0xff] %v911
      %928 = vst [vmem:[#allocation6 + $0x28] sm:$0xff] %v912
      %929 = vst [vmem:[#allocation6 + $0x30] sm:$0xff] %v913
      %930 = vst [vmem:[#allocation6 + $0x38] sm:$0xff] %v914
      %931 = vst [vmem:[#allocation6 + $0x40] sm:$0xff] %v915
      %932 = vst [vmem:[#allocation6 + $0x48] sm:$0xff] %v916
      %933 = vst [vmem:[#allocation6 + $0x50] sm:$0xff] %v917
      %934 = vst [vmem:[#allocation6 + $0x58] sm:$0xff] %v918
      %935 = vst [vmem:[#allocation6 + $0x60] sm:$0xff] %v919
      %936 = vst [vmem:[#allocation6 + $0x68] sm:$0xff] %v920
      %937 = vst [vmem:[#allocation6 + $0x70] sm:$0xff] %v921
      %938 = vst [vmem:[#allocation6 + $0x78] sm:$0xff] %v922
    $region29: #{tpu_custom_call.1} parent=1 // pred_fallthru
      _
    // Predicated region
    $region30: #{tpu_custom_call.1} parent=1 // pred_check
      _
    $region31: #{tpu_custom_call.1} parent=1 // pred_check_branch
      %940 = sbr.rel (0) target = $region33
    $region32: #{tpu_custom_call.1} parent=1 // pred_region
      %s942 = ssub.s32 2048, 2048
      %943 = vsyncadd [#allocation5], %s942
      %s944 = sshll.u32 [#allocation6], 4
      %s945 = int_to_ptr.vmem [resolvable:$true] %s944
      %950 = dma.vmem_to_hbm [thread:$0]  %s945, 2048, %s4, [#allocation5], 128, 128, 8
    $region33: #{tpu_custom_call.1} parent=1 // pred_fallthru
      _
    // Predicated region
    $region34: #{tpu_custom_call.1} parent=1 // pred_check
      _
    $region35: #{tpu_custom_call.1} parent=1 // pred_check_branch
      %952 = sbr.rel (0) target = $region37
    $region36: #{tpu_custom_call.1} parent=1 // pred_region
      %953 = dma.done [#allocation5], 2048
    $region37: #{tpu_custom_call.1} parent=1 // pred_fallthru
      _
    %954 = vsyncpa [#allocation4], 1
    %955 = vsyncpa [#allocation5], 1

</llo_original>
